<compile_context>
chip_gen: v5e
topology: v5e:2x2
jax: 0.10.0
libtpu: 0.0.40
codegen_flags: <defaults>
</compile_context>

<pallas_src>
import jax
import jax.numpy as jnp
import numpy as np
from jax.experimental import pallas as pl
from jax.experimental.pallas import tpu as pltpu

SUBLANE = 8
LANE = 128


def _round_up(x, m):
    return ((x + m - 1) // m) * m


def _pad2(arr, rows, cols):
    r, c = arr.shape
    if r == rows and c == cols:
        return arr
    return jnp.pad(arr, ((0, rows - r), (0, cols - c)))


def gcn_kernel(a_ref, x_ref, w_ref, b_ref, o_ref, acc_ref):
    """(A @ X) @ W + b, ReLU.  A/X tiles in bf16, f32 accumulation."""
    k = pl.program_id(1)

    @pl.when(k == 0)
    def _():
        acc_ref[...] = jnp.zeros_like(acc_ref)

    # Mean aggregation partial sum: acc += A_tile @ X_tile   (MXU, f32 acc)
    acc_ref[...] += jnp.dot(
        a_ref[...], x_ref[...], preferred_element_type=jnp.float32
    )

    @pl.when(k == pl.num_programs(1) - 1)
    def _():
        # NodeApplyModule: ReLU(agg @ W + b)  -- epilogue only once per row tile.
        h = jnp.dot(
            acc_ref[...], w_ref[...], preferred_element_type=jnp.float32
        ) + b_ref[...]
        o_ref[...] = jnp.maximum(h, 0.0).astype(o_ref.dtype)


def gcn_premixed_kernel(a_ref, xw_ref, b_ref, o_ref, acc_ref):
    """A @ (X W) + b, ReLU (used when Fout < Fin)."""
    k = pl.program_id(1)

    @pl.when(k == 0)
    def _():
        acc_ref[...] = jnp.zeros_like(acc_ref)

    acc_ref[...] += jnp.dot(
        a_ref[...], xw_ref[...], preferred_element_type=jnp.float32
    )

    @pl.when(k == pl.num_programs(1) - 1)
    def _():
        o_ref[...] = jnp.maximum(acc_ref[...] + b_ref[...], 0.0).astype(o_ref.dtype)


def gcn_forward(a_norm, x, w, b, *, tm=256, tk=1024):
    """a_norm: [N, N], x: [N, Fin], w: [Fin, Fout], b: [1|Fout] -> [N, Fout]."""
    n, fin = x.shape
    fout = w.shape[1]

    fin_p = _round_up(fin, LANE)
    fout_p = _round_up(fout, LANE)

    # Associativity dispatch: the N^2-scaled contraction width is min(Fin, Fout).
    premix = fout < fin
    if premix:
        feats = jnp.dot(x.astype(jnp.float32), w.astype(jnp.float32))  # [N, Fout]
        feat_w = fout_p
    else:
        feats = x
        feat_w = fin_p

    # Tile sizes: clamp to the (padded) problem, keep (8, 128) alignment.
    tm = _round_up(max(SUBLANE, min(tm, _round_up(n, SUBLANE))), SUBLANE)
    tk = _round_up(max(LANE, min(tk, _round_up(n, LANE))), LANE)
    n_rows = _round_up(n, tm)
    n_cols = _round_up(n, tk)

    # Pad and cast the two O(N)-sized streams to bf16; keep W/b in f32.
    a_p = _pad2(a_norm.astype(jnp.float32), n_rows, n_cols).astype(jnp.bfloat16)
    f_p = _pad2(feats.astype(jnp.float32), n_cols, feat_w).astype(jnp.bfloat16)
    b_p = _pad2(jnp.asarray(b, jnp.float32).reshape(1, -1), 1, fout_p)

    grid = (n_rows // tm, n_cols // tk)
    compiler_params = pltpu.CompilerParams(
        dimension_semantics=("parallel", "arbitrary"),
        vmem_limit_bytes=64 * 1024 * 1024,
    )

    if premix:
        cost = pl.CostEstimate(
            flops=int(2 * n_rows * n_cols * fout_p),
            transcendentals=0,
            bytes_accessed=int(
                a_p.size * 2 + f_p.size * 2 + b_p.size * 4 + n_rows * fout_p * 4
            ),
        )
        out_p = pl.pallas_call(
            gcn_premixed_kernel,
            out_shape=jax.ShapeDtypeStruct((n_rows, fout_p), jnp.float32),
            grid_spec=pltpu.PrefetchScalarGridSpec(
                num_scalar_prefetch=0,
                grid=grid,
                in_specs=[
                    pl.BlockSpec((tm, tk), lambda i, k: (i, k)),        # A_norm
                    pl.BlockSpec((tk, fout_p), lambda i, k: (k, 0)),    # X @ W
                    pl.BlockSpec((1, fout_p), lambda i, k: (0, 0)),     # bias (resident)
                ],
                out_specs=pl.BlockSpec((tm, fout_p), lambda i, k: (i, 0)),
                scratch_shapes=[pltpu.VMEM((tm, fout_p), jnp.float32)],
            ),
            compiler_params=compiler_params,
            cost_estimate=cost,
        )(a_p, f_p, b_p)
    else:
        w_p = _pad2(w.astype(jnp.float32), fin_p, fout_p)
        cost = pl.CostEstimate(
            flops=int(2 * n_rows * n_cols * fin_p + 2 * n_rows * fin_p * fout_p),
            transcendentals=0,
            bytes_accessed=int(
                a_p.size * 2 + f_p.size * 2 + w_p.size * 4 + b_p.size * 4
                + n_rows * fout_p * 4
            ),
        )
        out_p = pl.pallas_call(
            gcn_kernel,
            out_shape=jax.ShapeDtypeStruct((n_rows, fout_p), jnp.float32),
            grid_spec=pltpu.PrefetchScalarGridSpec(
                num_scalar_prefetch=0,
                grid=grid,
                in_specs=[
                    pl.BlockSpec((tm, tk), lambda i, k: (i, k)),          # A_norm
                    pl.BlockSpec((tk, fin_p), lambda i, k: (k, 0)),       # X
                    pl.BlockSpec((fin_p, fout_p), lambda i, k: (0, 0)),   # W (resident)
                    pl.BlockSpec((1, fout_p), lambda i, k: (0, 0)),       # bias (resident)
                ],
                out_specs=pl.BlockSpec((tm, fout_p), lambda i, k: (i, 0)),
                scratch_shapes=[pltpu.VMEM((tm, fin_p), jnp.float32)],
            ),
            compiler_params=compiler_params,
            cost_estimate=cost,
        )(a_p, f_p, w_p, b_p)

    return out_p[:n, :fout].astype(x.dtype)


def build_normalized_adjacency(edges, num_nodes):
    """edges: list of (src, dst). Returns row-normalized dense adjacency
    A_norm[dst, src] = 1/in_deg(dst); rows with in_deg 0 get an identity row
    (node keeps its own feature), matching DGL update_all behavior."""
    a = np.zeros((num_nodes, num_nodes), dtype=np.float32)
    for src, dst in edges:
        a[dst, src] = 1.0
    deg = a.sum(axis=1, keepdims=True)
    a_norm = np.where(
        deg > 0, a / np.maximum(deg, 1.0), np.eye(num_nodes, dtype=np.float32)
    )
    return a_norm


def _linear_params(key, in_feats, out_feats):
    """nn.Linear(in, out) init: uniform(-1/sqrt(in), 1/sqrt(in))."""
    kw, kb = jax.random.split(key)
    bound = 1.0 / np.sqrt(in_feats)
    w_pt = jax.random.uniform(
        kw, (out_feats, in_feats), minval=-bound, maxval=bound, dtype=jnp.float32
    )  # PyTorch layout [out, in]
    b_pt = jax.random.uniform(
        kb, (out_feats,), minval=-bound, maxval=bound, dtype=jnp.float32
    )
    return w_pt.T, b_pt.reshape(1, out_feats)  # kernel layout [in, out], [1, out]


def _reference(a_norm, x, w, b):
    return jnp.maximum(jnp.dot(jnp.dot(a_norm, x), w) + b, 0.0)


if __name__ == "__main__":
    # Small shapes: N=8 nodes, in_feats=16, out_feats=32
    N, IN_FEATS, OUT_FEATS = 8, 16, 32

    key = jax.random.PRNGKey(0)
    k_feat, k_lin1, k_feat2, k_lin2 = jax.random.split(key, 4)

    # Node features
    x = jax.random.normal(k_feat, (N, IN_FEATS), dtype=jnp.float32)

    # Deterministic small graph: chain 0->1->...->7 plus a few extra edges;
    # node 0 has no in-edges (exercises the deg==0 "keep own feature" path).
    edges = [(i, i + 1) for i in range(N - 1)]
    edges += [(3, 2), (5, 2), (6, 1)]
    a_norm = jnp.asarray(build_normalized_adjacency(edges, N))

    w1, b1 = _linear_params(k_lin1, IN_FEATS, OUT_FEATS)
    out1 = gcn_forward(a_norm, x, w1, b1)
    jax.block_until_ready(out1)
    ref1 = _reference(a_norm, x, w1, b1)
    # bf16 input streams -> ~1e-3 rel error vs the pure-f32 reference.
    np.testing.assert_allclose(np.asarray(out1), np.asarray(ref1), rtol=2e-2, atol=2e-2)

    # Second layer shape (Fout < Fin) to exercise the associativity-dispatch path.
    x2 = jax.random.normal(k_feat2, (N, OUT_FEATS), dtype=jnp.float32)
    w2, b2 = _linear_params(k_lin2, OUT_FEATS, IN_FEATS)
    out2 = gcn_forward(a_norm, x2, w2, b2)
    jax.block_until_ready(out2)
    ref2 = _reference(a_norm, x2, w2, b2)
    np.testing.assert_allclose(np.asarray(out2), np.asarray(ref2), rtol=2e-2, atol=2e-2)

    print("KERNEL_OK")
</pallas_src>

<mosaic_0001>
module attributes {stable_mosaic.version = 11 : i64} {
  func.func @gcn_kernel(%arg0: i32, %arg1: i32, %arg2: memref<8x128xbf16, #tpu.memory_space<vmem>>, %arg3: memref<128x128xbf16, #tpu.memory_space<vmem>>, %arg4: memref<128x128xf32, #tpu.memory_space<vmem>>, %arg5: memref<1x128xf32, #tpu.memory_space<vmem>>, %arg6: memref<8x128xf32, #tpu.memory_space<vmem>>, %arg7: memref<8x128xf32, #tpu.memory_space<vmem>>) attributes {dimension_semantics = [#tpu.dimension_semantics<parallel>, #tpu.dimension_semantics<arbitrary>], iteration_bounds = array<i64: 1, 1>, scalar_prefetch = 0 : i64, scratch_operands = 1 : i64, tpu.core_type = #tpu.core_type<tc>, window_params = [{transform_indices = @transform_0, window_bounds = array<i64: 8, 128>}, {transform_indices = @transform_1, window_bounds = array<i64: 128, 128>}, {pipeline_mode = #tpu.pipeline_mode<synchronous>, transform_indices = @transform_2, window_bounds = array<i64: 128, 128>}, {pipeline_mode = #tpu.pipeline_mode<synchronous>, transform_indices = @transform_3, window_bounds = array<i64: 1, 128>}, {transform_indices = @transform_4, window_bounds = array<i64: 8, 128>}]} {
    %c0_i32 = arith.constant 0 : i32
    %0 = arith.cmpi eq, %arg1, %c0_i32 : i32
    %1 = arith.extui %0 : i1 to i32
    %c0_i32_0 = arith.constant 0 : i32
    %2 = arith.cmpi ne, %1, %c0_i32_0 : i32
    scf.if %2 {
      %cst_10 = arith.constant 0.000000e+00 : f32
      %12 = vector.broadcast %cst_10 : f32 to vector<8x128xf32>
      %c0_11 = arith.constant 0 : index
      %c0_12 = arith.constant 0 : index
      %13 = vector.load %arg7[%c0_11, %c0_12] : memref<8x128xf32, #tpu.memory_space<vmem>>, vector<8x128xf32>
      tpu.vector_store %arg7[%c0_11, %c0_12], %12 {strides = array<i32>} : memref<8x128xf32, #tpu.memory_space<vmem>>, vector<8x128xf32>,
    } else {
    }
    %c0 = arith.constant 0 : index
    %c0_1 = arith.constant 0 : index
    %3 = vector.load %arg7[%c0, %c0_1] : memref<8x128xf32, #tpu.memory_space<vmem>>, vector<8x128xf32>
    %c0_2 = arith.constant 0 : index
    %c0_3 = arith.constant 0 : index
    %4 = vector.load %arg2[%c0_2, %c0_3] : memref<8x128xbf16, #tpu.memory_space<vmem>>, vector<8x128xbf16>
    %c0_4 = arith.constant 0 : index
    %c0_5 = arith.constant 0 : index
    %5 = vector.load %arg3[%c0_4, %c0_5] : memref<128x128xbf16, #tpu.memory_space<vmem>>, vector<128x128xbf16>
    %cst = arith.constant dense<0.000000e+00> : vector<8x128xf32>
    %6 = tpu.matmul %4, %5, %cst {dimension_numbers = #tpu.dot_dimension_numbers<[1], [0], [0], [1], [0, 0, 1, 1], [], []>} : vector<8x128xbf16>, vector<128x128xbf16>, vector<8x128xf32> -> vector<8x128xf32>
    %7 = arith.addf %3, %6 : vector<8x128xf32>
    %c0_6 = arith.constant 0 : index
    %c0_7 = arith.constant 0 : index
    %8 = vector.load %arg7[%c0_6, %c0_7] : memref<8x128xf32, #tpu.memory_space<vmem>>, vector<8x128xf32>
    tpu.vector_store %arg7[%c0_6, %c0_7], %7 {strides = array<i32>} : memref<8x128xf32, #tpu.memory_space<vmem>>, vector<8x128xf32>,
    %c0_i32_8 = arith.constant 0 : i32
    %9 = arith.cmpi eq, %arg1, %c0_i32_8 : i32
    %10 = arith.extui %9 : i1 to i32
    %c0_i32_9 = arith.constant 0 : i32
    %11 = arith.cmpi ne, %10, %c0_i32_9 : i32
    scf.if %11 {
      %c0_10 = arith.constant 0 : index
      %c0_11 = arith.constant 0 : index
      %12 = vector.load %arg7[%c0_10, %c0_11] : memref<8x128xf32, #tpu.memory_space<vmem>>, vector<8x128xf32>
      %c0_12 = arith.constant 0 : index
      %c0_13 = arith.constant 0 : index
      %13 = vector.load %arg4[%c0_12, %c0_13] : memref<128x128xf32, #tpu.memory_space<vmem>>, vector<128x128xf32>
      %cst_14 = arith.constant dense<0.000000e+00> : vector<8x128xf32>
      %14 = tpu.matmul %12, %13, %cst_14 {dimension_numbers = #tpu.dot_dimension_numbers<[1], [0], [0], [1], [0, 0, 1, 1], [], []>} : vector<8x128xf32>, vector<128x128xf32>, vector<8x128xf32> -> vector<8x128xf32>
      %c0_15 = arith.constant 0 : index
      %c0_16 = arith.constant 0 : index
      %15 = vector.load %arg5[%c0_15, %c0_16] : memref<1x128xf32, #tpu.memory_space<vmem>>, vector<1x128xf32>
      %16 = vector.broadcast %15 : vector<1x128xf32> to vector<8x128xf32>
      %17 = arith.addf %14, %16 : vector<8x128xf32>
      %cst_17 = arith.constant 0.000000e+00 : f32
      %18 = vector.broadcast %cst_17 : f32 to vector<8x128xf32>
      %19 = arith.maximumf %17, %18 : vector<8x128xf32>
      %c0_18 = arith.constant 0 : index
      %c0_19 = arith.constant 0 : index
      %20 = vector.load %arg6[%c0_18, %c0_19] : memref<8x128xf32, #tpu.memory_space<vmem>>, vector<8x128xf32>
      tpu.vector_store %arg6[%c0_18, %c0_19], %19 {strides = array<i32>} : memref<8x128xf32, #tpu.memory_space<vmem>>, vector<8x128xf32>,
    } else {
    }
    return
  }
  func.func @transform_0(%arg0: i32, %arg1: i32) -> (i32, i32) {
    %c0_i32 = arith.constant 0 : i32
    return %arg0, %arg1 : i32, i32
  }
  func.func @transform_1(%arg0: i32, %arg1: i32) -> (i32, i32) {
    %c0_i32 = arith.constant 0 : i32
    %c0_i32_0 = arith.constant 0 : i32
    return %arg1, %c0_i32 : i32, i32
  }
  func.func @transform_2(%arg0: i32, %arg1: i32) -> (i32, i32) {
    %c0_i32 = arith.constant 0 : i32
    %c0_i32_0 = arith.constant 0 : i32
    %c0_i32_1 = arith.constant 0 : i32
    return %c0_i32, %c0_i32_0 : i32, i32
  }
  func.func @transform_3(%arg0: i32, %arg1: i32) -> (i32, i32) {
    %c0_i32 = arith.constant 0 : i32
    %c0_i32_0 = arith.constant 0 : i32
    %c0_i32_1 = arith.constant 0 : i32
    return %c0_i32, %c0_i32_0 : i32, i32
  }
  func.func @transform_4(%arg0: i32, %arg1: i32) -> (i32, i32) {
    %c0_i32 = arith.constant 0 : i32
    %c0_i32_0 = arith.constant 0 : i32
    return %arg0, %c0_i32 : i32, i32
  }
}

</mosaic_0001>

<llo_original>
// kernel: tpu_custom_call.1
$region0: #{tpu_custom_call.1}
  #allocation0 [shape = 'u32[]', space=smem, size = 0x4, offset = 0x4, fixed_abs, tag = 'smem constant byte address 0x4 - core index']
  #allocation1 [shape = 'u32[72,128]{1,0:T(1,128)}', space=vmem, size = 0x9000, scoped, tag = 'internal scratch']
  #allocation2 [shape = 'f32[8,128]{1,0:T(8,128)}', space=vmem, size = 0x1000, scoped, tag = 'scratch operand']
  %s0 = inlined_call_operand.hbm [shape: bf16[8,128], index: 0, kind: input, shape index: {}]
  %s1 = inlined_call_operand.hbm [shape: bf16[128,128], index: 1, kind: input, shape index: {}]
  %s2 = inlined_call_operand.hbm [shape: f32[128,128], index: 2, kind: input, shape index: {}]
  %s3 = inlined_call_operand.vmem [shape: f32[1,128], index: 3, kind: input, shape index: {}]
  %s4 = inlined_call_operand.hbm [shape: f32[8,128], index: 4, kind: output, shape index: {}]
  %s5 = sld [smem:[#allocation0]]
  $region46: #{tpu_custom_call.1} parent=0
    _
  %s7 = ssub.s32 1, %s5
  %s8 = scalar_select 0, %s7, %s5
  $region1: #{tpu_custom_call.1} parent=0
    #allocation3 [shape = 'u8[2048]{0}', space=vmem, size = 0x800, scoped, tag = 'input window, operand 0, single buffered']
    #allocation4 [shape = 's32[1]{0}', space=sflag, size = 0x4, scoped, tag = 'scoped memory for tpu_custom_call.1']
    #allocation5 [shape = 's32[1]{0}', space=sflag, size = 0x4, scoped, tag = 'scoped memory for tpu_custom_call.1']
    #allocation6 [shape = 'u8[32768]{0}', space=vmem, size = 0x8000, scoped, tag = 'input window, operand 1, single buffered']
    #allocation7 [shape = 's32[1]{0}', space=sflag, size = 0x4, scoped, tag = 'scoped memory for tpu_custom_call.1']
    #allocation8 [shape = 'u8[65536]{0}', space=vmem, size = 0x10000, scoped, tag = 'input window, operand 2, single buffered']
    #allocation9 [shape = 'u8[4096]{0}', space=vmem, size = 0x1000, scoped, tag = 'output window, operand 0, single buffered']
    %9 = vsyncpa [#allocation4], 0
    %10 = vsyncpa [#allocation7], 0
    %11 = vsyncpa [#allocation5], 0
    // Predicated region
    $region2: #{tpu_custom_call.1} parent=1 // pred_check
      _
    $region3: #{tpu_custom_call.1} parent=1 // pred_check_branch
      %13 = sbr.rel (0) target = $region5
    $region4: #{tpu_custom_call.1} parent=1 // pred_region
      %15 = vsyncadd [#allocation4], 0
      %s17 = sshll.u32 %s0, 4
      %s18 = int_to_ptr.hbm [resolvable:$true] %s17
      %s19 = sshll.u32 [#allocation3], 4
      %s20 = int_to_ptr.vmem [resolvable:$true] %s19
      %22 = dma.hbm_to_vmem [thread:$0]  %s18, 64, %s20, [#allocation4]
    $region5: #{tpu_custom_call.1} parent=1 // pred_fallthru
      _
    // Predicated region
    $region6: #{tpu_custom_call.1} parent=1 // pred_check
      _
    $region7: #{tpu_custom_call.1} parent=1 // pred_check_branch
      %24 = sbr.rel (0) target = $region9
    $region8: #{tpu_custom_call.1} parent=1 // pred_region
      %26 = vsyncadd [#allocation7], 0
      %s27 = sshll.u32 %s1, 4
      %s28 = int_to_ptr.hbm [resolvable:$true] %s27
      %s29 = sshll.u32 [#allocation6], 4
      %s30 = int_to_ptr.vmem [resolvable:$true] %s29
      %35 = dma.hbm_to_vmem [thread:$0]  %s28, 1024, %s30, [#allocation7], 64, 64, 4
    $region9: #{tpu_custom_call.1} parent=1 // pred_fallthru
      _
    // Predicated region
    $region10: #{tpu_custom_call.1} parent=1 // pred_check
      _
    $region11: #{tpu_custom_call.1} parent=1 // pred_check_branch
      %37 = sbr.rel (0) target = $region13
    $region12: #{tpu_custom_call.1} parent=1 // pred_region
      %39 = vsyncadd [#allocation7], 0
      %s40 = sshll.u32 %s2, 4
      %s41 = int_to_ptr.hbm [resolvable:$true] %s40
      %s42 = sshll.u32 [#allocation8], 4
      %s43 = int_to_ptr.vmem [resolvable:$true] %s42
      %48 = dma.hbm_to_vmem [thread:$0]  %s41, 2048, %s43, [#allocation7], 128, 128, 8
    $region13: #{tpu_custom_call.1} parent=1 // pred_fallthru
      _
    // Predicated region
    $region14: #{tpu_custom_call.1} parent=1 // pred_check
      _
    $region15: #{tpu_custom_call.1} parent=1 // pred_check_branch
      %50 = sbr.rel (0) target = $region17
    $region16: #{tpu_custom_call.1} parent=1 // pred_region
      _
    $region17: #{tpu_custom_call.1} parent=1 // pred_fallthru
      _
    // Predicated region
    $region18: #{tpu_custom_call.1} parent=1 // pred_check
      _
    $region19: #{tpu_custom_call.1} parent=1 // pred_check_branch
      %52 = sbr.rel (0) target = $region21
    $region20: #{tpu_custom_call.1} parent=1 // pred_region
      %54 = dma.done [#allocation4], 64
    $region21: #{tpu_custom_call.1} parent=1 // pred_fallthru
      _
    // Predicated region
    $region22: #{tpu_custom_call.1} parent=1 // pred_check
      _
    $region23: #{tpu_custom_call.1} parent=1 // pred_check_branch
      %56 = sbr.rel (0) target = $region25
    $region24: #{tpu_custom_call.1} parent=1 // pred_region
      %58 = dma.done [#allocation7], 1024
    $region25: #{tpu_custom_call.1} parent=1 // pred_fallthru
      _
    // Predicated region
    $region26: #{tpu_custom_call.1} parent=1 // pred_check
      _
    $region27: #{tpu_custom_call.1} parent=1 // pred_check_branch
      %60 = sbr.rel (0) target = $region29
    $region28: #{tpu_custom_call.1} parent=1 // pred_region
      %62 = dma.done [#allocation7], 2048
    $region29: #{tpu_custom_call.1} parent=1 // pred_fallthru
      _
    %p63 = scmp.eq.s32.totalorder 0, 0
    // Predicated region
    $region30: #{tpu_custom_call.1} parent=1 // pred_check
      %p64 = pneg %p63
    $region31: #{tpu_custom_call.1} parent=1 // pred_check_branch
      %66 = sbr.rel (%p64) target = $region33
    $region32: #{tpu_custom_call.1} parent=1 // pred_region
      %67 = vst [vmem:[#allocation2] sm:$0xff] 0.0
    $region33: #{tpu_custom_call.1} parent=1 // pred_fallthru
      _
    %v68 = vld [vmem:[#allocation2] sm:$0xff]
    %v69 = vld [vmem:[#allocation3] sm:$0xf]
    %v70 = vld [vmem:[#allocation6] sm:$0xf]
    %v71 = vld [vmem:[#allocation6 + $0x4] sm:$0xf]
    %v72 = vld [vmem:[#allocation6 + $0x8] sm:$0xf]
    %v73 = vld [vmem:[#allocation6 + $0xc] sm:$0xf]
    %v74 = vld [vmem:[#allocation6 + $0x10] sm:$0xf]
    %v75 = vld [vmem:[#allocation6 + $0x14] sm:$0xf]
    %v76 = vld [vmem:[#allocation6 + $0x18] sm:$0xf]
    %v77 = vld [vmem:[#allocation6 + $0x1c] sm:$0xf]
    %v78 = vld [vmem:[#allocation6 + $0x20] sm:$0xf]
    %v79 = vld [vmem:[#allocation6 + $0x24] sm:$0xf]
    %v80 = vld [vmem:[#allocation6 + $0x28] sm:$0xf]
    %v81 = vld [vmem:[#allocation6 + $0x2c] sm:$0xf]
    %v82 = vld [vmem:[#allocation6 + $0x30] sm:$0xf]
    %v83 = vld [vmem:[#allocation6 + $0x34] sm:$0xf]
    %v84 = vld [vmem:[#allocation6 + $0x38] sm:$0xf]
    %v85 = vld [vmem:[#allocation6 + $0x3c] sm:$0xf]
    %v102 = vunpack.c.l.b16 %v70
    %v103 = vunpack.c.l.b16 %v71
    %v104 = vunpack.c.l.b16 %v72
    %v105 = vunpack.c.l.b16 %v73
    %v106 = vunpack.c.l.b16 %v74
    %v107 = vunpack.c.l.b16 %v75
    %v108 = vunpack.c.l.b16 %v76
    %v109 = vunpack.c.l.b16 %v77
    %v110 = vunpack.c.l.b16 %v78
    %v111 = vunpack.c.l.b16 %v79
    %v112 = vunpack.c.l.b16 %v80
    %v113 = vunpack.c.l.b16 %v81
    %v114 = vunpack.c.l.b16 %v82
    %v115 = vunpack.c.l.b16 %v83
    %v116 = vunpack.c.l.b16 %v84
    %v117 = vunpack.c.l.b16 %v85
    %v118 = vpack.c.b16 %v103, %v102
    %v119 = vpack.c.b16 %v105, %v104
    %v120 = vpack.c.b16 %v107, %v106
    %v121 = vpack.c.b16 %v109, %v108
    %v122 = vpack.c.b16 %v111, %v110
    %v123 = vpack.c.b16 %v113, %v112
    %v124 = vpack.c.b16 %v115, %v114
    %v125 = vpack.c.b16 %v117, %v116
    %134 = vmatpush.bf16.msra.mxu0 %v125
    %135 = vmatpush.bf16.msra.mxu0 %v124
    %136 = vmatpush.bf16.msra.mxu0 %v123
    %137 = vmatpush.bf16.msra.mxu0 %v122
    %138 = vmatpush.bf16.msra.mxu0 %v121
    %139 = vmatpush.bf16.msra.mxu0 %v120
    %140 = vmatpush.bf16.msra.mxu0 %v119
    %141 = vmatpush.bf16.msra.mxu0 %v118
    %142 = vmatmul.bf16.gmra.mxu0 %v69
    %v143 = vpop.f32.mrf.mxu0
    %v144 = vadd.f32 0.0, %v143
    %v145 = vpop.f32.mrf.mxu0
    %146 = vdwg.mxu0
    %v147 = vadd.f32 %v68, %v144
    %148 = vst [vmem:[#allocation2] sm:$0xff] %v147
    // Predicated region
    $region34: #{tpu_custom_call.1} parent=1 // pred_check
      %p149 = pneg %p63
    $region35: #{tpu_custom_call.1} parent=1 // pred_check_branch
      %151 = sbr.rel (%p149) target = $region37
    $region36: #{tpu_custom_call.1} parent=1 // pred_region
      %v152 = vld [vmem:[#allocation2] sm:$0xff]
      %v153 = vld [vmem:[#allocation8] sm:$0xff]
      %v154 = vld [vmem:[#allocation8 + $0x8] sm:$0xff]
      %v155 = vld [vmem:[#allocation8 + $0x10] sm:$0xff]
      %v156 = vld [vmem:[#allocation8 + $0x18] sm:$0xff]
      %v157 = vld [vmem:[#allocation8 + $0x20] sm:$0xff]
      %v158 = vld [vmem:[#allocation8 + $0x28] sm:$0xff]
      %v159 = vld [vmem:[#allocation8 + $0x30] sm:$0xff]
      %v160 = vld [vmem:[#allocation8 + $0x38] sm:$0xff]
      %v161 = vld [vmem:[#allocation8 + $0x40] sm:$0xff]
      %v162 = vld [vmem:[#allocation8 + $0x48] sm:$0xff]
      %v163 = vld [vmem:[#allocation8 + $0x50] sm:$0xff]
      %v164 = vld [vmem:[#allocation8 + $0x58] sm:$0xff]
      %v165 = vld [vmem:[#allocation8 + $0x60] sm:$0xff]
      %v166 = vld [vmem:[#allocation8 + $0x68] sm:$0xff]
      %v167 = vld [vmem:[#allocation8 + $0x70] sm:$0xff]
      %v168 = vld [vmem:[#allocation8 + $0x78] sm:$0xff]
      %v169 = vld [vmem:[%s3] sm:$0x1]
      %v171 = vperm.slane %v169, 0
      %173 = vmatpush.msra.mxu0 %v168
      %174 = vmatpush.msra.mxu0 %v167
      %175 = vmatpush.msra.mxu0 %v166
      %176 = vmatpush.msra.mxu0 %v165
      %177 = vmatpush.msra.mxu0 %v164
      %178 = vmatpush.msra.mxu0 %v163
      %179 = vmatpush.msra.mxu0 %v162
      %180 = vmatpush.msra.mxu0 %v161
      %181 = vmatpush.msra.mxu0 %v160
      %182 = vmatpush.msra.mxu0 %v159
      %183 = vmatpush.msra.mxu0 %v158
      %184 = vmatpush.msra.mxu0 %v157
      %185 = vmatpush.msra.mxu0 %v156
      %186 = vmatpush.msra.mxu0 %v155
      %187 = vmatpush.msra.mxu0 %v154
      %188 = vmatpush.msra.mxu0 %v153
      %189 = vmatmul.f32.gmra.mxu0 %v152
      %v190 = vpop.f32.mrf.mxu0
      %v191 = vadd.f32 %v171, %v190
      %192 = vdwg.mxu0
      %v193 = vmax.f32 %v191, 0.0
      %194 = vst [vmem:[#allocation9] sm:$0xff] %v193
    $region37: #{tpu_custom_call.1} parent=1 // pred_fallthru
      _
    // Predicated region
    $region38: #{tpu_custom_call.1} parent=1 // pred_check
      _
    $region39: #{tpu_custom_call.1} parent=1 // pred_check_branch
      %196 = sbr.rel (0) target = $region41
    $region40: #{tpu_custom_call.1} parent=1 // pred_region
      %198 = vsyncadd [#allocation5], 0
      %s200 = sshll.u32 [#allocation9], 4
      %s201 = int_to_ptr.vmem [resolvable:$true] %s200
      %s202 = sshll.u32 %s4, 4
      %s203 = int_to_ptr.hbm [resolvable:$true] %s202
      %205 = dma.vmem_to_hbm [thread:$0]  %s201, 128, %s203, [#allocation5]
    $region41: #{tpu_custom_call.1} parent=1 // pred_fallthru
      _
    // Predicated region
    $region42: #{tpu_custom_call.1} parent=1 // pred_check
      _
    $region43: #{tpu_custom_call.1} parent=1 // pred_check_branch
      %207 = sbr.rel (0) target = $region45
    $region44: #{tpu_custom_call.1} parent=1 // pred_region
      %209 = dma.done [#allocation5], 128
    $region45: #{tpu_custom_call.1} parent=1 // pred_fallthru
      _
    %210 = vsyncpa [#allocation4], 1
    %211 = vsyncpa [#allocation7], 1
    %212 = vsyncpa [#allocation5], 1

</llo_original>
